<compile_context>
chip_gen: v7x
topology: tpu7x:2x2x1
jax: 0.10.0
libtpu: 0.0.40
codegen_flags: <defaults>
</compile_context>

<pallas_src>
import functools

import jax
import jax.numpy as jnp
from jax import lax
from jax.experimental import pallas as pl
from jax.experimental.pallas import tpu as pltpu


def _cdiv(a, b):
    return -(-a // b)


# --------------------------------------------------------------------------- #
# Kernel
# --------------------------------------------------------------------------- #
def _llama_exit_kernel(x_ref, g_ref, w_ref, o_ref, xn_ref, *, eps):
    # x_ref:  (tm, H)  activation tile (full hidden dim)
    # g_ref:  (1, H)   RMSNorm gamma
    # w_ref:  (tn, H)  embedding-weight tile in native (V, H) layout
    # o_ref:  (tm, tn) logits tile
    # xn_ref: (tm, H)  VMEM scratch: normalized activations, reused across the
    #                  whole vocab sweep of this row tile.
    #
    # Grid = (vocab_half, row_tiles, vocab_inner).  The inner vocab axis is the
    # only sequential ("arbitrary") one, so gating the scratch init on
    # program_id(2) == 0 is valid on every core regardless of how the two
    # leading parallel axes are sharded across TensorCores.
    @pl.when(pl.program_id(2) == 0)
    def _():
        x = x_ref[...].astype(jnp.float32)
        var = jnp.mean(x * x, axis=-1, keepdims=True)
        xn = x * lax.rsqrt(var + eps) * g_ref[...].astype(jnp.float32)
        xn_ref[...] = xn.astype(xn_ref.dtype)

    # (tm, H) x (tn, H) contracting on H -> (tm, tn); f32 accumulation on MXU.
    # Mosaic feeds the transposed RHS natively (no explicit weight vxpose).
    o_ref[...] = lax.dot_general(
        xn_ref[...],
        w_ref[...],
        dimension_numbers=(((1,), (1,)), ((), ())),
        preferred_element_type=jnp.float32,
    ).astype(o_ref.dtype)


# --------------------------------------------------------------------------- #
# Generation-aware sizing helpers
# --------------------------------------------------------------------------- #
def _vmem_capacity_bytes():
    """Physical VMEM capacity; trace-time query with generation-aware fallback."""
    try:
        info = pltpu.get_tpu_info()
        cap = getattr(info, "vmem_capacity_bytes", None)
        if cap:
            return int(cap)
    except Exception:
        pass
    try:
        kind = jax.devices()[0].device_kind.lower()
        if "v7" in kind:
            return 64 * 1024 * 1024
        return 128 * 1024 * 1024  # v5e / v6e
    except Exception:
        return 64 * 1024 * 1024   # conservative


def _buffered_supported():
    """Whether this JAX version supports pipeline_mode=pl.Buffered(k)."""
    try:
        pl.BlockSpec((8, 128), lambda s, i, j: (i, 0), pipeline_mode=pl.Buffered(1))
        return True
    except Exception:
        return False


def _tm_candidates(M):
    if M < 8:
        return [M]
    m_up = ((M + 7) // 8) * 8
    cands = [c for c in (1024, 768, 512, 384, 256, 128, 64, 32, 16, 8) if c <= m_up]
    if m_up <= 1024 and m_up not in cands:
        cands.append(m_up)
    return sorted(set(cands), reverse=True)


def _tn_candidates(V):
    if V <= 128:
        return [V]
    v_up = ((V + 127) // 128) * 128
    cands = [c for c in (2048, 1024, 512, 384, 256, 128) if c <= v_up]
    if v_up <= 2048 and v_up not in cands:
        cands.append(v_up)
    return sorted(set(cands), reverse=True)


def _pick_tiles(M, V, H, *, x_bytes, w_bytes, out_bytes, c_bytes, x_buffers,
                vmem_budget):
    """Pick (tm, tn).  tm is the primary knob: the (V, H) weight is re-streamed
    from HBM once per row tile, so intensity ~ tm FLOP per weight byte.  Grow
    tm as far as VMEM allows (keeping a lane/MXU-friendly tn), then grow tn."""
    tm_cands = _tm_candidates(M)
    tn_cands = _tn_candidates(V)

    def fits(tm_, tn_):
        need = (
            2 * tn_ * H * w_bytes             # weight tile, double-buffered
            + x_buffers * tm_ * H * x_bytes   # activation tile
            + x_buffers * H * x_bytes         # gamma
            + 2 * tm_ * tn_ * out_bytes       # logits tile, double-buffered
            + tm_ * H * c_bytes               # xn scratch (compute dtype)
        )
        return need <= vmem_budget

    def search(tn_floor):
        for tm_ in tm_cands:
            for tn_ in tn_cands:
                if tn_ < tn_floor and tn_ != V:
                    continue
                if fits(tm_, tn_):
                    return tm_, tn_
        return None

    picked = search(256) or search(128) or (tm_cands[-1], tn_cands[-1])
    tm_, tn_ = picked

    # Prefer a tn giving an EVEN vocab-tile count so the tiles can be split
    # across the two v7x TensorCores (biggest effect on decode-sized M).
    n_tiles = _cdiv(V, tn_)
    if n_tiles > 1 and n_tiles % 2 == 1:
        for tn2 in tn_cands:
            if tn2 < tn_ and 2 * tn2 >= tn_ and _cdiv(V, tn2) % 2 == 0 and fits(tm_, tn2):
                tn_ = tn2
                break
    return tm_, tn_


# --------------------------------------------------------------------------- #
# Wrapper
# --------------------------------------------------------------------------- #
def llama_exit(hidden_states, norm_weight, embed_weight, *, eps=1e-6,
               out_dtype=None, tm=None, tn=None):
    """hidden_states: (B, S, H), norm_weight: (H,), embed_weight: (V, H).

    Returns logits (B, S, V) in `out_dtype` (default: hidden dtype), matching
    LlamaExit.forward = F.linear(RMSNorm(hidden), embed_tokens.weight).
    """
    B, S, H = hidden_states.shape
    V, H2 = embed_weight.shape
    assert H == H2, "hidden size mismatch"
    M = B * S
    if out_dtype is None:
        out_dtype = hidden_states.dtype

    compute_dtype = embed_weight.dtype  # feed the MXU in the weight's dtype
    x2d = hidden_states.reshape(M, H)
    # Mixed precision: if the weight is narrower (bf16) than the activations
    # (f32), cast in the wrapper -> halves activation DMA + VMEM; RMSNorm stats
    # are still computed in f32 inside the kernel.
    if jnp.dtype(compute_dtype).itemsize < jnp.dtype(x2d.dtype).itemsize:
        x2d = x2d.astype(compute_dtype)
    gamma = norm_weight.reshape(1, H)

    cap = _vmem_capacity_bytes()
    sizing_budget = int(cap * 0.65)                       # what tiles may use
    vmem_limit = min(int(cap * 0.85), 110 * 1024 * 1024)  # compiler limit

    buffered_ok = _buffered_supported()
    x_buffers = 1 if buffered_ok else 2

    tm_auto, tn_auto = _pick_tiles(
        M, V, H,
        x_bytes=jnp.dtype(x2d.dtype).itemsize,
        w_bytes=jnp.dtype(embed_weight.dtype).itemsize,
        out_bytes=jnp.dtype(out_dtype).itemsize,
        c_bytes=jnp.dtype(compute_dtype).itemsize,
        x_buffers=x_buffers,
        vmem_budget=sizing_budget,
    )
    tm = tm_auto if tm is None else tm
    tn = tn_auto if tn is None else tn

    n_rows = _cdiv(M, tm)
    n_vocab = _cdiv(V, tn)
    # Split vocab tiles in two along a leading parallel axis: on v7x each
    # TensorCore streams only half the embedding and both stay busy even when
    # there is a single row tile (decode).  Size-1 no-op otherwise.
    n_split = 2 if (n_vocab % 2 == 0 and n_vocab >= 2) else 1
    n_inner = n_vocab // n_split

    grid = (n_split, n_rows, n_inner)
    kernel = functools.partial(_llama_exit_kernel, eps=eps)

    x_map = lambda s, i, j: (i, 0)
    g_map = lambda s, i, j: (0, 0)
    w_map = lambda s, i, j: (s * n_inner + j, 0)
    o_map = lambda s, i, j: (i, s * n_inner + j)

    if buffered_ok:
        # Activation / gamma blocks only change on the row axis: single-buffer
        # them to free VMEM for larger tm (matters most on v7x's 64 MiB).
        x_spec = pl.BlockSpec((tm, H), x_map, pipeline_mode=pl.Buffered(1))
        g_spec = pl.BlockSpec((1, H), g_map, pipeline_mode=pl.Buffered(1))
    else:
        x_spec = pl.BlockSpec((tm, H), x_map)
        g_spec = pl.BlockSpec((1, H), g_map)
    w_spec = pl.BlockSpec((tn, H), w_map)
    o_spec = pl.BlockSpec((tm, tn), o_map)

    cost = pl.CostEstimate(
        flops=2 * M * V * H + 8 * M * H,
        transcendentals=M,
        bytes_accessed=(
            n_split * M * H * jnp.dtype(x2d.dtype).itemsize            # activations
            + n_rows * V * H * jnp.dtype(embed_weight.dtype).itemsize  # weight, once per row tile
            + M * V * jnp.dtype(out_dtype).itemsize                    # logits
        ),
    )

    out = pl.pallas_call(
        kernel,
        out_shape=jax.ShapeDtypeStruct((M, V), out_dtype),
        grid_spec=pltpu.PrefetchScalarGridSpec(
            num_scalar_prefetch=0,
            grid=grid,
            in_specs=[x_spec, g_spec, w_spec],
            out_specs=o_spec,
            scratch_shapes=[pltpu.VMEM((tm, H), compute_dtype)],
        ),
        compiler_params=pltpu.CompilerParams(
            # vocab-half and row axes are independent -> megacore-shardable;
            # the inner vocab axis must stay sequential per core because the
            # xn scratch (initialized at program_id(2) == 0) is reused along it.
            dimension_semantics=("parallel", "parallel", "arbitrary"),
            vmem_limit_bytes=int(vmem_limit),
        ),
        cost_estimate=cost,
    )(x2d, gamma, embed_weight)

    return out.reshape(B, S, V)


# --------------------------------------------------------------------------- #
# Reference + self-test
# --------------------------------------------------------------------------- #
def _reference(hidden_states, norm_weight, embed_weight, eps=1e-6):
    x = hidden_states.astype(jnp.float32)
    var = jnp.mean(x * x, axis=-1, keepdims=True)
    xn = x * lax.rsqrt(var + eps) * norm_weight.astype(jnp.float32)
    return jnp.einsum("bsh,vh->bsv", xn, embed_weight.astype(jnp.float32))


if __name__ == "__main__":
    # Small config consistent with the module.
    batch, seq = 2, 8
    hidden_size = 32
    vocab_size = 256
    pad_token_id = 0
    initializer_range = 0.02
    rms_norm_eps = 1e-6

    key = jax.random.PRNGKey(0)
    k_h, k_w = jax.random.split(key)

    hidden_states = jax.random.normal(k_h, (batch, seq, hidden_size), dtype=jnp.float32)
    # attention_mask is accepted by the PyTorch forward but unused; mirror that.
    attention_mask = jnp.ones((batch, seq), dtype=jnp.int32)  # unused

    # Deterministic parameter init matching init_weights():
    #   Embedding: normal(0, initializer_range), padding_idx row zeroed.
    #   RMSNorm weight: ones (LlamaRMSNorm default init).
    embed_weight = initializer_range * jax.random.normal(
        k_w, (vocab_size, hidden_size), dtype=jnp.float32)
    embed_weight = embed_weight.at[pad_token_id].set(0.0)
    norm_weight = jnp.ones((hidden_size,), dtype=jnp.float32)

    logits = llama_exit(hidden_states, norm_weight, embed_weight, eps=rms_norm_eps)
    logits = jax.block_until_ready(logits)

    ref = _reference(hidden_states, norm_weight, embed_weight, eps=rms_norm_eps)
    assert logits.shape == (batch, seq, vocab_size)
    max_err = float(jnp.max(jnp.abs(logits.astype(jnp.float32) - ref)))
    assert jnp.allclose(logits.astype(jnp.float32), ref, atol=2e-3, rtol=2e-3), \
        f"mismatch vs reference (max abs err {max_err})"

    print("KERNEL_OK")
</pallas_src>

<mosaic_0001>
module attributes {stable_mosaic.version = 11 : i64} {
  func.func @_llama_exit_kernel(%arg0: i32, %arg1: i32, %arg2: i32, %arg3: memref<16x32xf32, #tpu.memory_space<vmem>>, %arg4: memref<1x32xf32, #tpu.memory_space<vmem>>, %arg5: memref<256x32xf32, #tpu.memory_space<vmem>>, %arg6: memref<16x256xf32, #tpu.memory_space<vmem>>, %arg7: memref<16x32xf32, #tpu.memory_space<vmem>>) attributes {dimension_semantics = [#tpu.dimension_semantics<parallel>, #tpu.dimension_semantics<parallel>, #tpu.dimension_semantics<arbitrary>], iteration_bounds = array<i64: 1, 1, 1>, scalar_prefetch = 0 : i64, scratch_operands = 1 : i64, tpu.core_type = #tpu.core_type<tc>, window_params = [{pipeline_mode = #tpu.pipeline_mode<synchronous>, transform_indices = @transform_0, window_bounds = array<i64: 16, 32>}, {pipeline_mode = #tpu.pipeline_mode<synchronous>, transform_indices = @transform_1, window_bounds = array<i64: 1, 32>}, {transform_indices = @transform_2, window_bounds = array<i64: 256, 32>}, {transform_indices = @transform_3, window_bounds = array<i64: 16, 256>}]} {
    %c0_i32 = arith.constant 0 : i32
    %0 = arith.cmpi eq, %arg2, %c0_i32 : i32
    %1 = arith.extui %0 : i1 to i32
    %c0_i32_0 = arith.constant 0 : i32
    %2 = arith.cmpi ne, %1, %c0_i32_0 : i32
    scf.if %2 {
      %c0_6 = arith.constant 0 : index
      %c0_7 = arith.constant 0 : index
      %7 = vector.load %arg3[%c0_6, %c0_7] : memref<16x32xf32, #tpu.memory_space<vmem>>, vector<16x32xf32>
      %8 = arith.mulf %7, %7 : vector<16x32xf32>
      %cst_8 = arith.constant dense<0.000000e+00> : vector<16xf32>
      %9 = vector.multi_reduction <add>, %8, %cst_8 [1] : vector<16x32xf32> to vector<16xf32>
      %10 = vector.shape_cast %9 : vector<16xf32> to vector<16x1xf32>
      %cst_9 = arith.constant 3.200000e+01 : f32
      %11 = vector.broadcast %cst_9 : f32 to vector<16x1xf32>
      %12 = arith.divf %10, %11 : vector<16x1xf32>
      %cst_10 = arith.constant 9.99999997E-7 : f32
      %13 = vector.broadcast %cst_10 : f32 to vector<16x1xf32>
      %14 = arith.addf %12, %13 : vector<16x1xf32>
      %15 = math.rsqrt %14 : vector<16x1xf32>
      %16 = vector.broadcast %15 : vector<16x1xf32> to vector<16x32xf32>
      %17 = arith.mulf %7, %16 : vector<16x32xf32>
      %c0_11 = arith.constant 0 : index
      %c0_12 = arith.constant 0 : index
      %18 = vector.load %arg4[%c0_11, %c0_12] : memref<1x32xf32, #tpu.memory_space<vmem>>, vector<1x32xf32>
      %19 = vector.broadcast %18 : vector<1x32xf32> to vector<16x32xf32>
      %20 = arith.mulf %17, %19 : vector<16x32xf32>
      %c0_13 = arith.constant 0 : index
      %c0_14 = arith.constant 0 : index
      %21 = vector.load %arg7[%c0_13, %c0_14] : memref<16x32xf32, #tpu.memory_space<vmem>>, vector<16x32xf32>
      tpu.vector_store %arg7[%c0_13, %c0_14], %20 {strides = array<i32>} : memref<16x32xf32, #tpu.memory_space<vmem>>, vector<16x32xf32>,
    } else {
    }
    %c0 = arith.constant 0 : index
    %c0_1 = arith.constant 0 : index
    %3 = vector.load %arg7[%c0, %c0_1] : memref<16x32xf32, #tpu.memory_space<vmem>>, vector<16x32xf32>
    %c0_2 = arith.constant 0 : index
    %c0_3 = arith.constant 0 : index
    %4 = vector.load %arg5[%c0_2, %c0_3] : memref<256x32xf32, #tpu.memory_space<vmem>>, vector<256x32xf32>
    %cst = arith.constant dense<0.000000e+00> : vector<16x256xf32>
    %5 = tpu.matmul %3, %4, %cst {dimension_numbers = #tpu.dot_dimension_numbers<[1], [1], [0], [0], [0, 0, 1, 0], [], []>} : vector<16x32xf32>, vector<256x32xf32>, vector<16x256xf32> -> vector<16x256xf32>
    %c0_4 = arith.constant 0 : index
    %c0_5 = arith.constant 0 : index
    %6 = vector.load %arg6[%c0_4, %c0_5] : memref<16x256xf32, #tpu.memory_space<vmem>>, vector<16x256xf32>
    tpu.vector_store %arg6[%c0_4, %c0_5], %5 {strides = array<i32>} : memref<16x256xf32, #tpu.memory_space<vmem>>, vector<16x256xf32>,
    return
  }
  func.func @transform_0(%arg0: i32, %arg1: i32, %arg2: i32) -> (i32, i32) {
    %c0_i32 = arith.constant 0 : i32
    %c0_i32_0 = arith.constant 0 : i32
    return %arg1, %c0_i32 : i32, i32
  }
  func.func @transform_1(%arg0: i32, %arg1: i32, %arg2: i32) -> (i32, i32) {
    %c0_i32 = arith.constant 0 : i32
    %c0_i32_0 = arith.constant 0 : i32
    %c0_i32_1 = arith.constant 0 : i32
    return %c0_i32, %c0_i32_0 : i32, i32
  }
  func.func @transform_2(%arg0: i32, %arg1: i32, %arg2: i32) -> (i32, i32) {
    %c1_i32 = arith.constant 1 : i32
    %0 = arith.muli %arg0, %c1_i32 : i32
    %1 = arith.addi %0, %arg2 : i32
    %c0_i32 = arith.constant 0 : i32
    %c0_i32_0 = arith.constant 0 : i32
    return %1, %c0_i32 : i32, i32
  }
  func.func @transform_3(%arg0: i32, %arg1: i32, %arg2: i32) -> (i32, i32) {
    %c1_i32 = arith.constant 1 : i32
    %0 = arith.muli %arg0, %c1_i32 : i32
    %1 = arith.addi %0, %arg2 : i32
    %c0_i32 = arith.constant 0 : i32
    return %arg1, %1 : i32, i32
  }
}

</mosaic_0001>

<llo_original>
// kernel: tpu_custom_call.1
$region0: #{tpu_custom_call.1}
  #allocation0 [shape = 'u32[]', space=smem, size = 0x4, offset = 0x4, fixed_abs, tag = 'smem constant byte address 0x4 - core index']
  #allocation1 [shape = 'u32[144,128]{1,0:T(1,128)}', space=vmem, size = 0x12000, scoped, tag = 'internal scratch']
  #allocation2 [shape = 'f32[16,32]{1,0:T(8,128)}', space=vmem, size = 0x2000, scoped, tag = 'scratch operand']
  %s0 = inlined_call_operand.hbm [shape: f32[16,32], index: 0, kind: input, shape index: {}]
  %s1 = inlined_call_operand.hbm [shape: f32[1,32], index: 1, kind: input, shape index: {}]
  %s2 = inlined_call_operand.hbm [shape: f32[256,32], index: 2, kind: input, shape index: {}]
  %s3 = inlined_call_operand.hbm [shape: f32[16,256], index: 3, kind: output, shape index: {}]
  %s4 = sld [smem:[#allocation0]]
  $region38: #{tpu_custom_call.1} parent=0
    _
  %s6 = ssub.s32 1, %s4
  %s7 = scalar_select 0, %s6, %s4
  $region1: #{tpu_custom_call.1} parent=0
    #allocation3 [shape = 'u8[8192]{0}', space=vmem, size = 0x2000, scoped, tag = 'input window, operand 0, single buffered']
    #allocation4 [shape = 's32[1]{0}', space=sflag, size = 0x4, scoped, tag = 'scoped memory for tpu_custom_call.1']
    #allocation5 [shape = 's32[1]{0}', space=sflag, size = 0x4, scoped, tag = 'scoped memory for tpu_custom_call.1']
    #allocation6 [shape = 'u8[512]{0}', space=vmem, size = 0x400, scoped, tag = 'input window, operand 1, single buffered']
    #allocation7 [shape = 's32[1]{0}', space=sflag, size = 0x4, scoped, tag = 'scoped memory for tpu_custom_call.1']
    #allocation8 [shape = 'u8[131072]{0}', space=vmem, size = 0x20000, scoped, tag = 'input window, operand 2, single buffered']
    #allocation9 [shape = 'u8[16384]{0}', space=vmem, size = 0x4000, scoped, tag = 'output window, operand 0, single buffered']
    %8 = vsyncpa [#allocation4], 0
    %9 = vsyncpa [#allocation7], 0
    %10 = vsyncpa [#allocation5], 0
    // Predicated region
    $region2: #{tpu_custom_call.1} parent=1 // pred_check
      _
    $region3: #{tpu_custom_call.1} parent=1 // pred_check_branch
      %12 = sbr.rel (0) target = $region5
    $region4: #{tpu_custom_call.1} parent=1 // pred_region
      %s14 = ssub.s32 256, 256
      %15 = vsyncadd [#allocation4], %s14
      %s16 = sshll.u32 [#allocation3], 4
      %s17 = int_to_ptr.vmem [resolvable:$true] %s16
      %22 = dma.hbm_to_vmem [thread:$0]  %s0, 256, %s17, [#allocation4], 128, 128, 8
    $region5: #{tpu_custom_call.1} parent=1 // pred_fallthru
      _
    // Predicated region
    $region6: #{tpu_custom_call.1} parent=1 // pred_check
      _
    $region7: #{tpu_custom_call.1} parent=1 // pred_check_branch
      %24 = sbr.rel (0) target = $region9
    $region8: #{tpu_custom_call.1} parent=1 // pred_region
      %s26 = ssub.s32 16, 16
      %27 = vsyncadd [#allocation7], %s26
      %s29 = sshll.u32 [#allocation6], 4
      %s30 = int_to_ptr.vmem [resolvable:$true] %s29
      %32 = dma.hbm_to_vmem [thread:$0]  %s1, 16, %s30, [#allocation7]
    $region9: #{tpu_custom_call.1} parent=1 // pred_fallthru
      _
    // Predicated region
    $region10: #{tpu_custom_call.1} parent=1 // pred_check
      _
    $region11: #{tpu_custom_call.1} parent=1 // pred_check_branch
      %34 = sbr.rel (0) target = $region13
    $region12: #{tpu_custom_call.1} parent=1 // pred_region
      %s35 = sadd.s32 0, 0
      %s36 = smul.u32 32, %s35
      %s38 = ssub.s32 4096, 4096
      %39 = vsyncadd [#allocation7], %s38
      %s40 = smul.addr %s36, 128
      %s41 = scalar_lea.hbm %s2, %s40
      %s42 = sshll.u32 [#allocation8], 4
      %s43 = int_to_ptr.vmem [resolvable:$true] %s42
      %48 = dma.hbm_to_vmem [thread:$0]  %s41, 4096, %s43, [#allocation7], 128, 128, 8
    $region13: #{tpu_custom_call.1} parent=1 // pred_fallthru
      _
    // Predicated region
    $region14: #{tpu_custom_call.1} parent=1 // pred_check
      _
    $region15: #{tpu_custom_call.1} parent=1 // pred_check_branch
      %50 = sbr.rel (0) target = $region17
    $region16: #{tpu_custom_call.1} parent=1 // pred_region
      %51 = dma.done [#allocation4], 256
    $region17: #{tpu_custom_call.1} parent=1 // pred_fallthru
      _
    // Predicated region
    $region18: #{tpu_custom_call.1} parent=1 // pred_check
      _
    $region19: #{tpu_custom_call.1} parent=1 // pred_check_branch
      %53 = sbr.rel (0) target = $region21
    $region20: #{tpu_custom_call.1} parent=1 // pred_region
      %54 = dma.done [#allocation7], 16
    $region21: #{tpu_custom_call.1} parent=1 // pred_fallthru
      _
    // Predicated region
    $region22: #{tpu_custom_call.1} parent=1 // pred_check
      _
    $region23: #{tpu_custom_call.1} parent=1 // pred_check_branch
      %56 = sbr.rel (0) target = $region25
    $region24: #{tpu_custom_call.1} parent=1 // pred_region
      %57 = dma.done [#allocation7], 4096
    $region25: #{tpu_custom_call.1} parent=1 // pred_fallthru
      _
    %s58 = sadd.s32 0, 0
    %s59 = smul.u32 32, %s58
    %s60 = sadd.s32 0, 0
    %s61 = smul.u32 2, %s60
    %p62 = scmp.eq.s32.totalorder 0, 0
    // Predicated region
    $region26: #{tpu_custom_call.1} parent=1 // pred_check
      %p63 = pneg %p62
    $region27: #{tpu_custom_call.1} parent=1 // pred_check_branch
      %65 = sbr.rel (%p63) target = $region29
    $region28: #{tpu_custom_call.1} parent=1 // pred_region
      %v66 = vld [vmem:[#allocation3] sm:$0xff]
      %v67 = vld [vmem:[#allocation3 + $0x8] sm:$0xff]
      %v68 = vmul.f32 %v66, %v66
      %v69 = vmul.f32 %v67, %v67
      %vm70 = vcmask 261120
      %v71 = vsel %vm70, %v68, 0.0
      %72 = vadd.xlane.f32.xlu0 %v71
      %v73 = vpop.xlane.xlu0 %72
      %v74 = vsel %vm70, %v69, 0.0
      %75 = vadd.xlane.f32.xlu0 %v74
      %v76 = vpop.xlane.xlu0 %75
      %v77 = vrcp.pop 32.0
      %v78 = vmul.f32 %v73, %v77
      %v79 = vmul.f32 %v76, %v77
      %v80 = vadd.f32 %v78, 1e-06
      %v81 = vadd.f32 %v79, 1e-06
      %v82 = vrsqrt.pop %v80
      %v83 = vrsqrt.pop %v81
      %v84 = vmul.f32 %v66, %v82
      %v85 = vmul.f32 %v67, %v83
      %v86 = vld [vmem:[#allocation6] sm:$0x1]
      %v88 = vlaneseq
      %v89 = vshrl.u32 %v88, 7
      %v90 = vsub.s32 0, %v89
      %v91 = vrot.slane %v86, %v90
      %v93 = vmul.f32 %v84, %v91
      %v94 = vmul.f32 %v85, %v91
      %95 = vst.msk [vmem:[#allocation2] sm:$0xff] %vm70, %v93
      %96 = vst.msk [vmem:[#allocation2 + $0x8] sm:$0xff] %vm70, %v94
    $region29: #{tpu_custom_call.1} parent=1 // pred_fallthru
      _
    %v97 = vld [vmem:[#allocation2] sm:$0xff]
    %v98 = vld [vmem:[#allocation2 + $0x8] sm:$0xff]
    %v99 = vld [vmem:[#allocation8] sm:$0xff]
    %v100 = vld [vmem:[#allocation8 + $0x8] sm:$0xff]
    %v101 = vld [vmem:[#allocation8 + $0x10] sm:$0xff]
    %v102 = vld [vmem:[#allocation8 + $0x18] sm:$0xff]
    %v103 = vld [vmem:[#allocation8 + $0x20] sm:$0xff]
    %v104 = vld [vmem:[#allocation8 + $0x28] sm:$0xff]
    %v105 = vld [vmem:[#allocation8 + $0x30] sm:$0xff]
    %v106 = vld [vmem:[#allocation8 + $0x38] sm:$0xff]
    %v107 = vld [vmem:[#allocation8 + $0x40] sm:$0xff]
    %v108 = vld [vmem:[#allocation8 + $0x48] sm:$0xff]
    %v109 = vld [vmem:[#allocation8 + $0x50] sm:$0xff]
    %v110 = vld [vmem:[#allocation8 + $0x58] sm:$0xff]
    %v111 = vld [vmem:[#allocation8 + $0x60] sm:$0xff]
    %v112 = vld [vmem:[#allocation8 + $0x68] sm:$0xff]
    %v113 = vld [vmem:[#allocation8 + $0x70] sm:$0xff]
    %v114 = vld [vmem:[#allocation8 + $0x78] sm:$0xff]
    %v115 = vld [vmem:[#allocation8 + $0x80] sm:$0xff]
    %v116 = vld [vmem:[#allocation8 + $0x88] sm:$0xff]
    %v117 = vld [vmem:[#allocation8 + $0x90] sm:$0xff]
    %v118 = vld [vmem:[#allocation8 + $0x98] sm:$0xff]
    %v119 = vld [vmem:[#allocation8 + $0xa0] sm:$0xff]
    %v120 = vld [vmem:[#allocation8 + $0xa8] sm:$0xff]
    %v121 = vld [vmem:[#allocation8 + $0xb0] sm:$0xff]
    %v122 = vld [vmem:[#allocation8 + $0xb8] sm:$0xff]
    %v123 = vld [vmem:[#allocation8 + $0xc0] sm:$0xff]
    %v124 = vld [vmem:[#allocation8 + $0xc8] sm:$0xff]
    %v125 = vld [vmem:[#allocation8 + $0xd0] sm:$0xff]
    %v126 = vld [vmem:[#allocation8 + $0xd8] sm:$0xff]
    %v127 = vld [vmem:[#allocation8 + $0xe0] sm:$0xff]
    %v128 = vld [vmem:[#allocation8 + $0xe8] sm:$0xff]
    %v129 = vld [vmem:[#allocation8 + $0xf0] sm:$0xff]
    %v130 = vld [vmem:[#allocation8 + $0xf8] sm:$0xff]
    %vm131 = vcmask 261120
    %v133 = vsel %vm131, %v97, 0
    %v136 = vsel %vm131, %v98, 0
    %v139 = vsel %vm131, %v99, 0
    %v142 = vsel %vm131, %v100, 0
    %v145 = vsel %vm131, %v101, 0
    %v148 = vsel %vm131, %v102, 0
    %v151 = vsel %vm131, %v103, 0
    %v154 = vsel %vm131, %v104, 0
    %v157 = vsel %vm131, %v105, 0
    %v160 = vsel %vm131, %v106, 0
    %v163 = vsel %vm131, %v107, 0
    %v166 = vsel %vm131, %v108, 0
    %v169 = vsel %vm131, %v109, 0
    %v172 = vsel %vm131, %v110, 0
    %v175 = vsel %vm131, %v111, 0
    %v178 = vsel %vm131, %v112, 0
    %v181 = vsel %vm131, %v113, 0
    %v184 = vsel %vm131, %v114, 0
    %v187 = vsel %vm131, %v115, 0
    %v190 = vsel %vm131, %v116, 0
    %v193 = vsel %vm131, %v117, 0
    %v196 = vsel %vm131, %v118, 0
    %v199 = vsel %vm131, %v119, 0
    %v202 = vsel %vm131, %v120, 0
    %v205 = vsel %vm131, %v121, 0
    %v208 = vsel %vm131, %v122, 0
    %v211 = vsel %vm131, %v123, 0
    %v214 = vsel %vm131, %v124, 0
    %v217 = vsel %vm131, %v125, 0
    %v220 = vsel %vm131, %v126, 0
    %v223 = vsel %vm131, %v127, 0
    %v226 = vsel %vm131, %v128, 0
    %v229 = vsel %vm131, %v129, 0
    %v232 = vsel %vm131, %v130, 0
    %234 = vmatprep.subr.mxu0 0.0
    %235 = vmatpush1.xpose.msra.mxu0 %v139
    %236 = vmatprep.subr.mxu0 0.0
    %237 = vmatpush1.xpose.msra.mxu0 %v142
    %238 = vmatprep.subr.mxu0 0.0
    %239 = vmatpush1.xpose.msra.mxu0 %v145
    %240 = vmatprep.subr.mxu0 0.0
    %241 = vmatpush1.xpose.msra.mxu0 %v148
    %242 = vmatprep.subr.mxu0 0.0
    %243 = vmatpush1.xpose.msra.mxu0 %v151
    %244 = vmatprep.subr.mxu0 0.0
    %245 = vmatpush1.xpose.msra.mxu0 %v154
    %246 = vmatprep.subr.mxu0 0.0
    %247 = vmatpush1.xpose.msra.mxu0 %v157
    %248 = vmatprep.subr.mxu0 0.0
    %249 = vmatpush1.xpose.msra.mxu0 %v160
    %250 = vmatprep.subr.mxu0 0.0
    %251 = vmatpush1.xpose.msra.mxu0 %v163
    %252 = vmatprep.subr.mxu0 0.0
    %253 = vmatpush1.xpose.msra.mxu0 %v166
    %254 = vmatprep.subr.mxu0 0.0
    %255 = vmatpush1.xpose.msra.mxu0 %v169
    %256 = vmatprep.subr.mxu0 0.0
    %257 = vmatpush1.xpose.msra.mxu0 %v172
    %258 = vmatprep.subr.mxu0 0.0
    %259 = vmatpush1.xpose.msra.mxu0 %v175
    %260 = vmatprep.subr.mxu0 0.0
    %261 = vmatpush1.xpose.msra.mxu0 %v178
    %262 = vmatprep.subr.mxu0 0.0
    %263 = vmatpush1.xpose.msra.mxu0 %v181
    %264 = vmatprep.subr.mxu0 0.0
    %265 = vmatpush1.xpose.msra.mxu0 %v184
    %266 = vmatprep.subr.mxu0 0.0
    %267 = vmatpush1.xpose.msra.mxu0 %v187
    %268 = vmatprep.subr.mxu0 0.0
    %269 = vmatpush1.xpose.msra.mxu0 %v190
    %270 = vmatprep.subr.mxu0 0.0
    %271 = vmatpush1.xpose.msra.mxu0 %v193
    %272 = vmatprep.subr.mxu0 0.0
    %273 = vmatpush1.xpose.msra.mxu0 %v196
    %274 = vmatprep.subr.mxu0 0.0
    %275 = vmatpush1.xpose.msra.mxu0 %v199
    %276 = vmatprep.subr.mxu0 0.0
    %277 = vmatpush1.xpose.msra.mxu0 %v202
    %278 = vmatprep.subr.mxu0 0.0
    %279 = vmatpush1.xpose.msra.mxu0 %v205
    %280 = vmatprep.subr.mxu0 0.0
    %281 = vmatpush1.xpose.msra.mxu0 %v208
    %282 = vmatprep.subr.mxu0 0.0
    %283 = vmatpush1.xpose.msra.mxu0 %v211
    %284 = vmatprep.subr.mxu0 0.0
    %285 = vmatpush1.xpose.msra.mxu0 %v214
    %286 = vmatprep.subr.mxu0 0.0
    %287 = vmatpush1.xpose.msra.mxu0 %v217
    %288 = vmatprep.subr.mxu0 0.0
    %289 = vmatpush1.xpose.msra.mxu0 %v220
    %290 = vmatprep.subr.mxu0 0.0
    %291 = vmatpush1.xpose.msra.mxu0 %v223
    %292 = vmatprep.subr.mxu0 0.0
    %293 = vmatpush1.xpose.msra.mxu0 %v226
    %294 = vmatprep.subr.mxu0 0.0
    %295 = vmatpush1.xpose.msra.mxu0 %v229
    %296 = vmatprep.subr.mxu0 0.0
    %297 = vmatpush1.xpose.msra.mxu0 %v232
    %298 = vmatprep.mubr.f32.mxu0 0.0
    %299 = vmatmul.mubr.f32.gmra.mrb[0].mxu0 %v133
    %v300 = vpop.f32.mrb[0].mxu0
    %v301 = vadd.f32 0.0, %v300
    %v302 = vpop.f32.mrb[0].mxu0
    %v303 = vadd.f32 0.0, %v302
    %304 = vmatprep.mubr.f32.mxu0 0.0
    %305 = vmatmul.mubr.f32.gmra.mrb[0].mxu0 %v136
    %v306 = vpop.f32.mrb[0].mxu0
    %v307 = vadd.f32 0.0, %v306
    %v308 = vpop.f32.mrb[0].mxu0
    %v309 = vadd.f32 0.0, %v308
    %310 = vdwg.mxu0
    %311 = vst [vmem:[#allocation9] sm:$0xff] %v301
    %312 = vst [vmem:[#allocation9 + $0x8] sm:$0xff] %v303
    %313 = vst [vmem:[#allocation9 + $0x10] sm:$0xff] %v307
    %314 = vst [vmem:[#allocation9 + $0x18] sm:$0xff] %v309
    // Predicated region
    $region30: #{tpu_custom_call.1} parent=1 // pred_check
      _
    $region31: #{tpu_custom_call.1} parent=1 // pred_check_branch
      %316 = sbr.rel (0) target = $region33
    $region32: #{tpu_custom_call.1} parent=1 // pred_region
      %s317 = sadd.s32 0, 0
      %s318 = smul.u32 2, %s317
      %s320 = ssub.s32 512, 512
      %321 = vsyncadd [#allocation5], %s320
      %s322 = smul.addr %s318, 128
      %s323 = scalar_lea.hbm %s3, %s322
      %s324 = sshll.u32 [#allocation9], 4
      %s325 = int_to_ptr.vmem [resolvable:$true] %s324
      %330 = dma.vmem_to_hbm [thread:$0]  %s325, 512, %s323, [#allocation5], 256, 256, 16
    $region33: #{tpu_custom_call.1} parent=1 // pred_fallthru
      _
    // Predicated region
    $region34: #{tpu_custom_call.1} parent=1 // pred_check
      _
    $region35: #{tpu_custom_call.1} parent=1 // pred_check_branch
      %332 = sbr.rel (0) target = $region37
    $region36: #{tpu_custom_call.1} parent=1 // pred_region
      %333 = dma.done [#allocation5], 512
    $region37: #{tpu_custom_call.1} parent=1 // pred_fallthru
      _
    %334 = vsyncpa [#allocation4], 1
    %335 = vsyncpa [#allocation7], 1
    %336 = vsyncpa [#allocation5], 1

</llo_original>
